<compile_context>
chip_gen: v6e
topology: v6e:2x2x1
jax: 0.10.0
libtpu: 0.0.40
codegen_flags: <defaults>
</compile_context>

<pallas_src>
import jax
import jax.numpy as jnp
from jax import lax
from jax.experimental import pallas as pl
from jax.experimental.pallas import tpu as pltpu

# ---- model hyperparameters (mirrors the PyTorch script) ----
FUTURE_WINDOW = 1
HIDDEN_SIZE = 64
INPUT_FEATURES = 3
NUM_LAYERS = 1  # kernel implements the single-layer case


def lstm_recurrence_kernel(xw_ref, whh_ref, wfc_ref, bfc_ref, out_ref):
    """One grid step = one batch tile.  Full time recurrence via fori_loop carries.

    xw_ref : (T, Bt, 4H)  precomputed x @ W_ih^T + (b_ih + b_hh), gate order i|f|g|o
    whh_ref: (H, 4H)      W_hh^T
    wfc_ref: (1, H)       fc weight row
    bfc_ref: (1, 1)       fc bias
    out_ref: (Bt, 1)
    """
    T, Bt, _ = xw_ref.shape
    H = whh_ref.shape[0]

    def step(t, carry):
        h, c = carry
        # gates = x_t @ W_ih^T + b  (precomputed, streamed from VMEM)  +  h @ W_hh^T
        gates = xw_ref[t] + jnp.dot(h, whh_ref[...],
                                    preferred_element_type=jnp.float32)  # (Bt, 4H)
        i_g = jax.nn.sigmoid(gates[:, 0 * H:1 * H])
        f_g = jax.nn.sigmoid(gates[:, 1 * H:2 * H])
        g_g = jnp.tanh(gates[:, 2 * H:3 * H])
        o_g = jax.nn.sigmoid(gates[:, 3 * H:4 * H])
        c_new = f_g * c + i_g * g_g
        h_new = o_g * jnp.tanh(c_new)
        return h_new, c_new

    h0 = jnp.zeros((Bt, H), jnp.float32)
    c0 = jnp.zeros((Bt, H), jnp.float32)
    # Small static T: fully unroll so the LLO scheduler sees the whole recurrence.
    h_T, _ = lax.fori_loop(0, T, step, (h0, c0), unroll=True)

    # Dropout(p=0.3) is identity at inference time (module.eval()).
    # fc head on the VPU/XLU: (Bt,H)*(1,H) -> lane reduce, avoids an MXU push for a
    # 1-lane result.  (Valid because FUTURE_WINDOW == 1.)
    out_ref[...] = (jnp.sum(h_T * wfc_ref[...], axis=-1, keepdims=True)
                    + bfc_ref[...])


def lstm_model_forward(x, params, *, batch_tile=None):
    """x: (B, T, I) float32, batch_first like the PyTorch module."""
    B, T, I = x.shape
    H = HIDDEN_SIZE

    # Batch tiling: one batch tile per grid step, grid axis is "parallel" so large
    # batches shard across TensorCores (pick a multiple of 8, ideally 128-256, when
    # B is large enough to fill the 256x256 MXUs on v6e/v7x).
    Bt = B if batch_tile is None else batch_tile
    assert B % Bt == 0 and (Bt == B or Bt % 8 == 0), \
        "batch tile must equal B or be a multiple of 8"
    nb = B // Bt

    whh_t = params["w_hh"].T                                      # (H, 4H)
    bias = params["b_ih"] + params["b_hh"]                        # (4H,)
    wfc = params["w_fc"].reshape(FUTURE_WINDOW, H)                # (1, H)
    bfc = params["b_fc"].reshape(1, FUTURE_WINDOW)                # (1, 1)

    # Hoist the input projection out of the recurrence: one batched matmul over all
    # timesteps, bias folded in.  Produces the time-major (T, B, 4H) slab directly.
    xw = jnp.einsum("bti,gi->tbg", x, params["w_ih"],
                    preferred_element_type=jnp.float32) + bias[None, None, :]

    # TODO(synk): for large T, block the time axis of xw (e.g. 128 steps per grid
    # iteration, "arbitrary" axis) instead of one (T, Bt, 4H) VMEM block.
    out = pl.pallas_call(
        lstm_recurrence_kernel,
        out_shape=jax.ShapeDtypeStruct((B, FUTURE_WINDOW), jnp.float32),
        grid=(nb,),
        in_specs=[
            pl.BlockSpec((T, Bt, 4 * H), lambda b: (0, b, 0)),          # xW slab
            pl.BlockSpec((H, 4 * H), lambda b: (0, 0)),                 # W_hh^T
            pl.BlockSpec((FUTURE_WINDOW, H), lambda b: (0, 0)),         # W_fc
            pl.BlockSpec((1, FUTURE_WINDOW), lambda b: (0, 0)),         # b_fc
        ],
        out_specs=pl.BlockSpec((Bt, FUTURE_WINDOW), lambda b: (b, 0)),
        compiler_params=pltpu.CompilerParams(
            dimension_semantics=("parallel",),   # batch tiles are independent
        ),
    )(xw, whh_t, wfc, bfc)
    return out


def init_params(key):
    """Deterministic init matching the PyTorch parameter shapes:
    U(-1/sqrt(H), 1/sqrt(H)) like nn.LSTM / nn.Linear defaults."""
    H, I = HIDDEN_SIZE, INPUT_FEATURES
    k = 1.0 / jnp.sqrt(jnp.float32(H))
    keys = jax.random.split(key, 6)
    uni = lambda kk, shape: jax.random.uniform(kk, shape, jnp.float32, -k, k)
    return {
        "w_ih": uni(keys[0], (4 * H, I)),
        "w_hh": uni(keys[1], (4 * H, H)),
        "b_ih": uni(keys[2], (4 * H,)),
        "b_hh": uni(keys[3], (4 * H,)),
        "w_fc": uni(keys[4], (FUTURE_WINDOW, H)),
        "b_fc": uni(keys[5], (FUTURE_WINDOW,)),
    }


def _reference_forward(x, params):
    """Pure-JAX reference (same math) for a sanity check."""
    B, T, I = x.shape
    H = HIDDEN_SIZE
    h = jnp.zeros((B, H), jnp.float32)
    c = jnp.zeros((B, H), jnp.float32)
    w_ih_t, w_hh_t = params["w_ih"].T, params["w_hh"].T
    bias = params["b_ih"] + params["b_hh"]
    for t in range(T):
        g = x[:, t, :] @ w_ih_t + h @ w_hh_t + bias
        i_g = jax.nn.sigmoid(g[:, 0 * H:1 * H])
        f_g = jax.nn.sigmoid(g[:, 1 * H:2 * H])
        g_g = jnp.tanh(g[:, 2 * H:3 * H])
        o_g = jax.nn.sigmoid(g[:, 3 * H:4 * H])
        c = f_g * c + i_g * g_g
        h = o_g * jnp.tanh(c)
    return h @ params["w_fc"].T + params["b_fc"]


if __name__ == "__main__":
    B, T = 2, 8
    key = jax.random.PRNGKey(0)
    k_x, k_p = jax.random.split(key)
    x = jax.random.normal(k_x, (B, T, INPUT_FEATURES), jnp.float32)
    params = init_params(k_p)

    out = lstm_model_forward(x, params)
    out = jax.block_until_ready(out)

    ref = _reference_forward(x, params)
    assert out.shape == (B, FUTURE_WINDOW)
    assert jnp.allclose(out, ref, atol=1e-5, rtol=1e-5), (out, ref)

    print("KERNEL_OK")
</pallas_src>

<mosaic_0001>
module attributes {stable_mosaic.version = 11 : i64} {
  func.func @lstm_recurrence_kernel(%arg0: i32, %arg1: memref<8x2x256xf32, #tpu.memory_space<vmem>>, %arg2: memref<64x256xf32, #tpu.memory_space<vmem>>, %arg3: memref<1x64xf32, #tpu.memory_space<vmem>>, %arg4: memref<1x1xf32, #tpu.memory_space<vmem>>, %arg5: memref<2x1xf32, #tpu.memory_space<vmem>>) attributes {dimension_semantics = [#tpu.dimension_semantics<parallel>], iteration_bounds = array<i64: 1>, scalar_prefetch = 0 : i64, scratch_operands = 0 : i64, tpu.core_type = #tpu.core_type<tc>, window_params = [{transform_indices = @transform_0, window_bounds = array<i64: 8, 2, 256>}, {pipeline_mode = #tpu.pipeline_mode<synchronous>, transform_indices = @transform_1, window_bounds = array<i64: 64, 256>}, {pipeline_mode = #tpu.pipeline_mode<synchronous>, transform_indices = @transform_2, window_bounds = array<i64: 1, 64>}, {pipeline_mode = #tpu.pipeline_mode<synchronous>, transform_indices = @transform_3, window_bounds = array<i64: 1, 1>}, {transform_indices = @transform_4, window_bounds = array<i64: 2, 1>}]} {
    %cst = arith.constant 0.000000e+00 : f32
    %0 = vector.broadcast %cst : f32 to vector<2x64xf32>
    %cst_0 = arith.constant 0.000000e+00 : f32
    %1 = vector.broadcast %cst_0 : f32 to vector<2x64xf32>
    %c0_i32 = arith.constant 0 : i32
    %2 = arith.index_cast %c0_i32 : i32 to index
    %c0 = arith.constant 0 : index
    %c0_1 = arith.constant 0 : index
    %3 = vector.load %arg1[%2, %c0, %c0_1] : memref<8x2x256xf32, #tpu.memory_space<vmem>>, vector<1x2x256xf32>
    %4 = vector.shape_cast %3 : vector<1x2x256xf32> to vector<2x256xf32>
    %c0_2 = arith.constant 0 : index
    %c0_3 = arith.constant 0 : index
    %5 = vector.load %arg2[%c0_2, %c0_3] : memref<64x256xf32, #tpu.memory_space<vmem>>, vector<64x256xf32>
    %cst_4 = arith.constant dense<0.000000e+00> : vector<2x256xf32>
    %6 = tpu.matmul %0, %5, %cst_4 {dimension_numbers = #tpu.dot_dimension_numbers<[1], [0], [0], [1], [0, 0, 1, 1], [], []>} : vector<2x64xf32>, vector<64x256xf32>, vector<2x256xf32> -> vector<2x256xf32>
    %7 = arith.addf %4, %6 : vector<2x256xf32>
    %8 = vector.extract_strided_slice %7 {offsets = [0, 0], sizes = [2, 64], strides = [1, 1]} : vector<2x256xf32> to vector<2x64xf32>
    %9 = arith.negf %8 : vector<2x64xf32>
    %10 = math.exp %9 : vector<2x64xf32>
    %cst_5 = arith.constant 1.000000e+00 : f32
    %11 = vector.broadcast %cst_5 : f32 to vector<2x64xf32>
    %12 = arith.addf %11, %10 : vector<2x64xf32>
    %13 = arith.divf %11, %12 : vector<2x64xf32>
    %14 = vector.extract_strided_slice %7 {offsets = [0, 64], sizes = [2, 64], strides = [1, 1]} : vector<2x256xf32> to vector<2x64xf32>
    %15 = arith.negf %14 : vector<2x64xf32>
    %16 = math.exp %15 : vector<2x64xf32>
    %cst_6 = arith.constant 1.000000e+00 : f32
    %17 = vector.broadcast %cst_6 : f32 to vector<2x64xf32>
    %18 = arith.addf %17, %16 : vector<2x64xf32>
    %19 = arith.divf %17, %18 : vector<2x64xf32>
    %20 = vector.extract_strided_slice %7 {offsets = [0, 128], sizes = [2, 64], strides = [1, 1]} : vector<2x256xf32> to vector<2x64xf32>
    %21 = math.tanh %20 : vector<2x64xf32>
    %22 = vector.extract_strided_slice %7 {offsets = [0, 192], sizes = [2, 64], strides = [1, 1]} : vector<2x256xf32> to vector<2x64xf32>
    %23 = arith.negf %22 : vector<2x64xf32>
    %24 = math.exp %23 : vector<2x64xf32>
    %cst_7 = arith.constant 1.000000e+00 : f32
    %25 = vector.broadcast %cst_7 : f32 to vector<2x64xf32>
    %26 = arith.addf %25, %24 : vector<2x64xf32>
    %27 = arith.divf %25, %26 : vector<2x64xf32>
    %28 = arith.mulf %19, %1 : vector<2x64xf32>
    %29 = arith.mulf %13, %21 : vector<2x64xf32>
    %30 = arith.addf %28, %29 : vector<2x64xf32>
    %31 = math.tanh %30 : vector<2x64xf32>
    %32 = arith.mulf %27, %31 : vector<2x64xf32>
    %c1_i32 = arith.constant 1 : i32
    %33 = arith.index_cast %c1_i32 : i32 to index
    %c0_8 = arith.constant 0 : index
    %c0_9 = arith.constant 0 : index
    %34 = vector.load %arg1[%33, %c0_8, %c0_9] : memref<8x2x256xf32, #tpu.memory_space<vmem>>, vector<1x2x256xf32>
    %35 = vector.shape_cast %34 : vector<1x2x256xf32> to vector<2x256xf32>
    %c0_10 = arith.constant 0 : index
    %c0_11 = arith.constant 0 : index
    %36 = vector.load %arg2[%c0_10, %c0_11] : memref<64x256xf32, #tpu.memory_space<vmem>>, vector<64x256xf32>
    %cst_12 = arith.constant dense<0.000000e+00> : vector<2x256xf32>
    %37 = tpu.matmul %32, %36, %cst_12 {dimension_numbers = #tpu.dot_dimension_numbers<[1], [0], [0], [1], [0, 0, 1, 1], [], []>} : vector<2x64xf32>, vector<64x256xf32>, vector<2x256xf32> -> vector<2x256xf32>
    %38 = arith.addf %35, %37 : vector<2x256xf32>
    %39 = vector.extract_strided_slice %38 {offsets = [0, 0], sizes = [2, 64], strides = [1, 1]} : vector<2x256xf32> to vector<2x64xf32>
    %40 = arith.negf %39 : vector<2x64xf32>
    %41 = math.exp %40 : vector<2x64xf32>
    %cst_13 = arith.constant 1.000000e+00 : f32
    %42 = vector.broadcast %cst_13 : f32 to vector<2x64xf32>
    %43 = arith.addf %42, %41 : vector<2x64xf32>
    %44 = arith.divf %42, %43 : vector<2x64xf32>
    %45 = vector.extract_strided_slice %38 {offsets = [0, 64], sizes = [2, 64], strides = [1, 1]} : vector<2x256xf32> to vector<2x64xf32>
    %46 = arith.negf %45 : vector<2x64xf32>
    %47 = math.exp %46 : vector<2x64xf32>
    %cst_14 = arith.constant 1.000000e+00 : f32
    %48 = vector.broadcast %cst_14 : f32 to vector<2x64xf32>
    %49 = arith.addf %48, %47 : vector<2x64xf32>
    %50 = arith.divf %48, %49 : vector<2x64xf32>
    %51 = vector.extract_strided_slice %38 {offsets = [0, 128], sizes = [2, 64], strides = [1, 1]} : vector<2x256xf32> to vector<2x64xf32>
    %52 = math.tanh %51 : vector<2x64xf32>
    %53 = vector.extract_strided_slice %38 {offsets = [0, 192], sizes = [2, 64], strides = [1, 1]} : vector<2x256xf32> to vector<2x64xf32>
    %54 = arith.negf %53 : vector<2x64xf32>
    %55 = math.exp %54 : vector<2x64xf32>
    %cst_15 = arith.constant 1.000000e+00 : f32
    %56 = vector.broadcast %cst_15 : f32 to vector<2x64xf32>
    %57 = arith.addf %56, %55 : vector<2x64xf32>
    %58 = arith.divf %56, %57 : vector<2x64xf32>
    %59 = arith.mulf %50, %30 : vector<2x64xf32>
    %60 = arith.mulf %44, %52 : vector<2x64xf32>
    %61 = arith.addf %59, %60 : vector<2x64xf32>
    %62 = math.tanh %61 : vector<2x64xf32>
    %63 = arith.mulf %58, %62 : vector<2x64xf32>
    %c2_i32 = arith.constant 2 : i32
    %64 = arith.index_cast %c2_i32 : i32 to index
    %c0_16 = arith.constant 0 : index
    %c0_17 = arith.constant 0 : index
    %65 = vector.load %arg1[%64, %c0_16, %c0_17] : memref<8x2x256xf32, #tpu.memory_space<vmem>>, vector<1x2x256xf32>
    %66 = vector.shape_cast %65 : vector<1x2x256xf32> to vector<2x256xf32>
    %c0_18 = arith.constant 0 : index
    %c0_19 = arith.constant 0 : index
    %67 = vector.load %arg2[%c0_18, %c0_19] : memref<64x256xf32, #tpu.memory_space<vmem>>, vector<64x256xf32>
    %cst_20 = arith.constant dense<0.000000e+00> : vector<2x256xf32>
    %68 = tpu.matmul %63, %67, %cst_20 {dimension_numbers = #tpu.dot_dimension_numbers<[1], [0], [0], [1], [0, 0, 1, 1], [], []>} : vector<2x64xf32>, vector<64x256xf32>, vector<2x256xf32> -> vector<2x256xf32>
    %69 = arith.addf %66, %68 : vector<2x256xf32>
    %70 = vector.extract_strided_slice %69 {offsets = [0, 0], sizes = [2, 64], strides = [1, 1]} : vector<2x256xf32> to vector<2x64xf32>
    %71 = arith.negf %70 : vector<2x64xf32>
    %72 = math.exp %71 : vector<2x64xf32>
    %cst_21 = arith.constant 1.000000e+00 : f32
    %73 = vector.broadcast %cst_21 : f32 to vector<2x64xf32>
    %74 = arith.addf %73, %72 : vector<2x64xf32>
    %75 = arith.divf %73, %74 : vector<2x64xf32>
    %76 = vector.extract_strided_slice %69 {offsets = [0, 64], sizes = [2, 64], strides = [1, 1]} : vector<2x256xf32> to vector<2x64xf32>
    %77 = arith.negf %76 : vector<2x64xf32>
    %78 = math.exp %77 : vector<2x64xf32>
    %cst_22 = arith.constant 1.000000e+00 : f32
    %79 = vector.broadcast %cst_22 : f32 to vector<2x64xf32>
    %80 = arith.addf %79, %78 : vector<2x64xf32>
    %81 = arith.divf %79, %80 : vector<2x64xf32>
    %82 = vector.extract_strided_slice %69 {offsets = [0, 128], sizes = [2, 64], strides = [1, 1]} : vector<2x256xf32> to vector<2x64xf32>
    %83 = math.tanh %82 : vector<2x64xf32>
    %84 = vector.extract_strided_slice %69 {offsets = [0, 192], sizes = [2, 64], strides = [1, 1]} : vector<2x256xf32> to vector<2x64xf32>
    %85 = arith.negf %84 : vector<2x64xf32>
    %86 = math.exp %85 : vector<2x64xf32>
    %cst_23 = arith.constant 1.000000e+00 : f32
    %87 = vector.broadcast %cst_23 : f32 to vector<2x64xf32>
    %88 = arith.addf %87, %86 : vector<2x64xf32>
    %89 = arith.divf %87, %88 : vector<2x64xf32>
    %90 = arith.mulf %81, %61 : vector<2x64xf32>
    %91 = arith.mulf %75, %83 : vector<2x64xf32>
    %92 = arith.addf %90, %91 : vector<2x64xf32>
    %93 = math.tanh %92 : vector<2x64xf32>
    %94 = arith.mulf %89, %93 : vector<2x64xf32>
    %c3_i32 = arith.constant 3 : i32
    %95 = arith.index_cast %c3_i32 : i32 to index
    %c0_24 = arith.constant 0 : index
    %c0_25 = arith.constant 0 : index
    %96 = vector.load %arg1[%95, %c0_24, %c0_25] : memref<8x2x256xf32, #tpu.memory_space<vmem>>, vector<1x2x256xf32>
    %97 = vector.shape_cast %96 : vector<1x2x256xf32> to vector<2x256xf32>
    %c0_26 = arith.constant 0 : index
    %c0_27 = arith.constant 0 : index
    %98 = vector.load %arg2[%c0_26, %c0_27] : memref<64x256xf32, #tpu.memory_space<vmem>>, vector<64x256xf32>
    %cst_28 = arith.constant dense<0.000000e+00> : vector<2x256xf32>
    %99 = tpu.matmul %94, %98, %cst_28 {dimension_numbers = #tpu.dot_dimension_numbers<[1], [0], [0], [1], [0, 0, 1, 1], [], []>} : vector<2x64xf32>, vector<64x256xf32>, vector<2x256xf32> -> vector<2x256xf32>
    %100 = arith.addf %97, %99 : vector<2x256xf32>
    %101 = vector.extract_strided_slice %100 {offsets = [0, 0], sizes = [2, 64], strides = [1, 1]} : vector<2x256xf32> to vector<2x64xf32>
    %102 = arith.negf %101 : vector<2x64xf32>
    %103 = math.exp %102 : vector<2x64xf32>
    %cst_29 = arith.constant 1.000000e+00 : f32
    %104 = vector.broadcast %cst_29 : f32 to vector<2x64xf32>
    %105 = arith.addf %104, %103 : vector<2x64xf32>
    %106 = arith.divf %104, %105 : vector<2x64xf32>
    %107 = vector.extract_strided_slice %100 {offsets = [0, 64], sizes = [2, 64], strides = [1, 1]} : vector<2x256xf32> to vector<2x64xf32>
    %108 = arith.negf %107 : vector<2x64xf32>
    %109 = math.exp %108 : vector<2x64xf32>
    %cst_30 = arith.constant 1.000000e+00 : f32
    %110 = vector.broadcast %cst_30 : f32 to vector<2x64xf32>
    %111 = arith.addf %110, %109 : vector<2x64xf32>
    %112 = arith.divf %110, %111 : vector<2x64xf32>
    %113 = vector.extract_strided_slice %100 {offsets = [0, 128], sizes = [2, 64], strides = [1, 1]} : vector<2x256xf32> to vector<2x64xf32>
    %114 = math.tanh %113 : vector<2x64xf32>
    %115 = vector.extract_strided_slice %100 {offsets = [0, 192], sizes = [2, 64], strides = [1, 1]} : vector<2x256xf32> to vector<2x64xf32>
    %116 = arith.negf %115 : vector<2x64xf32>
    %117 = math.exp %116 : vector<2x64xf32>
    %cst_31 = arith.constant 1.000000e+00 : f32
    %118 = vector.broadcast %cst_31 : f32 to vector<2x64xf32>
    %119 = arith.addf %118, %117 : vector<2x64xf32>
    %120 = arith.divf %118, %119 : vector<2x64xf32>
    %121 = arith.mulf %112, %92 : vector<2x64xf32>
    %122 = arith.mulf %106, %114 : vector<2x64xf32>
    %123 = arith.addf %121, %122 : vector<2x64xf32>
    %124 = math.tanh %123 : vector<2x64xf32>
    %125 = arith.mulf %120, %124 : vector<2x64xf32>
    %c4_i32 = arith.constant 4 : i32
    %126 = arith.index_cast %c4_i32 : i32 to index
    %c0_32 = arith.constant 0 : index
    %c0_33 = arith.constant 0 : index
    %127 = vector.load %arg1[%126, %c0_32, %c0_33] : memref<8x2x256xf32, #tpu.memory_space<vmem>>, vector<1x2x256xf32>
    %128 = vector.shape_cast %127 : vector<1x2x256xf32> to vector<2x256xf32>
    %c0_34 = arith.constant 0 : index
    %c0_35 = arith.constant 0 : index
    %129 = vector.load %arg2[%c0_34, %c0_35] : memref<64x256xf32, #tpu.memory_space<vmem>>, vector<64x256xf32>
    %cst_36 = arith.constant dense<0.000000e+00> : vector<2x256xf32>
    %130 = tpu.matmul %125, %129, %cst_36 {dimension_numbers = #tpu.dot_dimension_numbers<[1], [0], [0], [1], [0, 0, 1, 1], [], []>} : vector<2x64xf32>, vector<64x256xf32>, vector<2x256xf32> -> vector<2x256xf32>
    %131 = arith.addf %128, %130 : vector<2x256xf32>
    %132 = vector.extract_strided_slice %131 {offsets = [0, 0], sizes = [2, 64], strides = [1, 1]} : vector<2x256xf32> to vector<2x64xf32>
    %133 = arith.negf %132 : vector<2x64xf32>
    %134 = math.exp %133 : vector<2x64xf32>
    %cst_37 = arith.constant 1.000000e+00 : f32
    %135 = vector.broadcast %cst_37 : f32 to vector<2x64xf32>
    %136 = arith.addf %135, %134 : vector<2x64xf32>
    %137 = arith.divf %135, %136 : vector<2x64xf32>
    %138 = vector.extract_strided_slice %131 {offsets = [0, 64], sizes = [2, 64], strides = [1, 1]} : vector<2x256xf32> to vector<2x64xf32>
    %139 = arith.negf %138 : vector<2x64xf32>
    %140 = math.exp %139 : vector<2x64xf32>
    %cst_38 = arith.constant 1.000000e+00 : f32
    %141 = vector.broadcast %cst_38 : f32 to vector<2x64xf32>
    %142 = arith.addf %141, %140 : vector<2x64xf32>
    %143 = arith.divf %141, %142 : vector<2x64xf32>
    %144 = vector.extract_strided_slice %131 {offsets = [0, 128], sizes = [2, 64], strides = [1, 1]} : vector<2x256xf32> to vector<2x64xf32>
    %145 = math.tanh %144 : vector<2x64xf32>
    %146 = vector.extract_strided_slice %131 {offsets = [0, 192], sizes = [2, 64], strides = [1, 1]} : vector<2x256xf32> to vector<2x64xf32>
    %147 = arith.negf %146 : vector<2x64xf32>
    %148 = math.exp %147 : vector<2x64xf32>
    %cst_39 = arith.constant 1.000000e+00 : f32
    %149 = vector.broadcast %cst_39 : f32 to vector<2x64xf32>
    %150 = arith.addf %149, %148 : vector<2x64xf32>
    %151 = arith.divf %149, %150 : vector<2x64xf32>
    %152 = arith.mulf %143, %123 : vector<2x64xf32>
    %153 = arith.mulf %137, %145 : vector<2x64xf32>
    %154 = arith.addf %152, %153 : vector<2x64xf32>
    %155 = math.tanh %154 : vector<2x64xf32>
    %156 = arith.mulf %151, %155 : vector<2x64xf32>
    %c5_i32 = arith.constant 5 : i32
    %157 = arith.index_cast %c5_i32 : i32 to index
    %c0_40 = arith.constant 0 : index
    %c0_41 = arith.constant 0 : index
    %158 = vector.load %arg1[%157, %c0_40, %c0_41] : memref<8x2x256xf32, #tpu.memory_space<vmem>>, vector<1x2x256xf32>
    %159 = vector.shape_cast %158 : vector<1x2x256xf32> to vector<2x256xf32>
    %c0_42 = arith.constant 0 : index
    %c0_43 = arith.constant 0 : index
    %160 = vector.load %arg2[%c0_42, %c0_43] : memref<64x256xf32, #tpu.memory_space<vmem>>, vector<64x256xf32>
    %cst_44 = arith.constant dense<0.000000e+00> : vector<2x256xf32>
    %161 = tpu.matmul %156, %160, %cst_44 {dimension_numbers = #tpu.dot_dimension_numbers<[1], [0], [0], [1], [0, 0, 1, 1], [], []>} : vector<2x64xf32>, vector<64x256xf32>, vector<2x256xf32> -> vector<2x256xf32>
    %162 = arith.addf %159, %161 : vector<2x256xf32>
    %163 = vector.extract_strided_slice %162 {offsets = [0, 0], sizes = [2, 64], strides = [1, 1]} : vector<2x256xf32> to vector<2x64xf32>
    %164 = arith.negf %163 : vector<2x64xf32>
    %165 = math.exp %164 : vector<2x64xf32>
    %cst_45 = arith.constant 1.000000e+00 : f32
    %166 = vector.broadcast %cst_45 : f32 to vector<2x64xf32>
    %167 = arith.addf %166, %165 : vector<2x64xf32>
    %168 = arith.divf %166, %167 : vector<2x64xf32>
    %169 = vector.extract_strided_slice %162 {offsets = [0, 64], sizes = [2, 64], strides = [1, 1]} : vector<2x256xf32> to vector<2x64xf32>
    %170 = arith.negf %169 : vector<2x64xf32>
    %171 = math.exp %170 : vector<2x64xf32>
    %cst_46 = arith.constant 1.000000e+00 : f32
    %172 = vector.broadcast %cst_46 : f32 to vector<2x64xf32>
    %173 = arith.addf %172, %171 : vector<2x64xf32>
    %174 = arith.divf %172, %173 : vector<2x64xf32>
    %175 = vector.extract_strided_slice %162 {offsets = [0, 128], sizes = [2, 64], strides = [1, 1]} : vector<2x256xf32> to vector<2x64xf32>
    %176 = math.tanh %175 : vector<2x64xf32>
    %177 = vector.extract_strided_slice %162 {offsets = [0, 192], sizes = [2, 64], strides = [1, 1]} : vector<2x256xf32> to vector<2x64xf32>
    %178 = arith.negf %177 : vector<2x64xf32>
    %179 = math.exp %178 : vector<2x64xf32>
    %cst_47 = arith.constant 1.000000e+00 : f32
    %180 = vector.broadcast %cst_47 : f32 to vector<2x64xf32>
    %181 = arith.addf %180, %179 : vector<2x64xf32>
    %182 = arith.divf %180, %181 : vector<2x64xf32>
    %183 = arith.mulf %174, %154 : vector<2x64xf32>
    %184 = arith.mulf %168, %176 : vector<2x64xf32>
    %185 = arith.addf %183, %184 : vector<2x64xf32>
    %186 = math.tanh %185 : vector<2x64xf32>
    %187 = arith.mulf %182, %186 : vector<2x64xf32>
    %c6_i32 = arith.constant 6 : i32
    %188 = arith.index_cast %c6_i32 : i32 to index
    %c0_48 = arith.constant 0 : index
    %c0_49 = arith.constant 0 : index
    %189 = vector.load %arg1[%188, %c0_48, %c0_49] : memref<8x2x256xf32, #tpu.memory_space<vmem>>, vector<1x2x256xf32>
    %190 = vector.shape_cast %189 : vector<1x2x256xf32> to vector<2x256xf32>
    %c0_50 = arith.constant 0 : index
    %c0_51 = arith.constant 0 : index
    %191 = vector.load %arg2[%c0_50, %c0_51] : memref<64x256xf32, #tpu.memory_space<vmem>>, vector<64x256xf32>
    %cst_52 = arith.constant dense<0.000000e+00> : vector<2x256xf32>
    %192 = tpu.matmul %187, %191, %cst_52 {dimension_numbers = #tpu.dot_dimension_numbers<[1], [0], [0], [1], [0, 0, 1, 1], [], []>} : vector<2x64xf32>, vector<64x256xf32>, vector<2x256xf32> -> vector<2x256xf32>
    %193 = arith.addf %190, %192 : vector<2x256xf32>
    %194 = vector.extract_strided_slice %193 {offsets = [0, 0], sizes = [2, 64], strides = [1, 1]} : vector<2x256xf32> to vector<2x64xf32>
    %195 = arith.negf %194 : vector<2x64xf32>
    %196 = math.exp %195 : vector<2x64xf32>
    %cst_53 = arith.constant 1.000000e+00 : f32
    %197 = vector.broadcast %cst_53 : f32 to vector<2x64xf32>
    %198 = arith.addf %197, %196 : vector<2x64xf32>
    %199 = arith.divf %197, %198 : vector<2x64xf32>
    %200 = vector.extract_strided_slice %193 {offsets = [0, 64], sizes = [2, 64], strides = [1, 1]} : vector<2x256xf32> to vector<2x64xf32>
    %201 = arith.negf %200 : vector<2x64xf32>
    %202 = math.exp %201 : vector<2x64xf32>
    %cst_54 = arith.constant 1.000000e+00 : f32
    %203 = vector.broadcast %cst_54 : f32 to vector<2x64xf32>
    %204 = arith.addf %203, %202 : vector<2x64xf32>
    %205 = arith.divf %203, %204 : vector<2x64xf32>
    %206 = vector.extract_strided_slice %193 {offsets = [0, 128], sizes = [2, 64], strides = [1, 1]} : vector<2x256xf32> to vector<2x64xf32>
    %207 = math.tanh %206 : vector<2x64xf32>
    %208 = vector.extract_strided_slice %193 {offsets = [0, 192], sizes = [2, 64], strides = [1, 1]} : vector<2x256xf32> to vector<2x64xf32>
    %209 = arith.negf %208 : vector<2x64xf32>
    %210 = math.exp %209 : vector<2x64xf32>
    %cst_55 = arith.constant 1.000000e+00 : f32
    %211 = vector.broadcast %cst_55 : f32 to vector<2x64xf32>
    %212 = arith.addf %211, %210 : vector<2x64xf32>
    %213 = arith.divf %211, %212 : vector<2x64xf32>
    %214 = arith.mulf %205, %185 : vector<2x64xf32>
    %215 = arith.mulf %199, %207 : vector<2x64xf32>
    %216 = arith.addf %214, %215 : vector<2x64xf32>
    %217 = math.tanh %216 : vector<2x64xf32>
    %218 = arith.mulf %213, %217 : vector<2x64xf32>
    %c7_i32 = arith.constant 7 : i32
    %219 = arith.index_cast %c7_i32 : i32 to index
    %c0_56 = arith.constant 0 : index
    %c0_57 = arith.constant 0 : index
    %220 = vector.load %arg1[%219, %c0_56, %c0_57] : memref<8x2x256xf32, #tpu.memory_space<vmem>>, vector<1x2x256xf32>
    %221 = vector.shape_cast %220 : vector<1x2x256xf32> to vector<2x256xf32>
    %c0_58 = arith.constant 0 : index
    %c0_59 = arith.constant 0 : index
    %222 = vector.load %arg2[%c0_58, %c0_59] : memref<64x256xf32, #tpu.memory_space<vmem>>, vector<64x256xf32>
    %cst_60 = arith.constant dense<0.000000e+00> : vector<2x256xf32>
    %223 = tpu.matmul %218, %222, %cst_60 {dimension_numbers = #tpu.dot_dimension_numbers<[1], [0], [0], [1], [0, 0, 1, 1], [], []>} : vector<2x64xf32>, vector<64x256xf32>, vector<2x256xf32> -> vector<2x256xf32>
    %224 = arith.addf %221, %223 : vector<2x256xf32>
    %225 = vector.extract_strided_slice %224 {offsets = [0, 0], sizes = [2, 64], strides = [1, 1]} : vector<2x256xf32> to vector<2x64xf32>
    %226 = arith.negf %225 : vector<2x64xf32>
    %227 = math.exp %226 : vector<2x64xf32>
    %cst_61 = arith.constant 1.000000e+00 : f32
    %228 = vector.broadcast %cst_61 : f32 to vector<2x64xf32>
    %229 = arith.addf %228, %227 : vector<2x64xf32>
    %230 = arith.divf %228, %229 : vector<2x64xf32>
    %231 = vector.extract_strided_slice %224 {offsets = [0, 64], sizes = [2, 64], strides = [1, 1]} : vector<2x256xf32> to vector<2x64xf32>
    %232 = arith.negf %231 : vector<2x64xf32>
    %233 = math.exp %232 : vector<2x64xf32>
    %cst_62 = arith.constant 1.000000e+00 : f32
    %234 = vector.broadcast %cst_62 : f32 to vector<2x64xf32>
    %235 = arith.addf %234, %233 : vector<2x64xf32>
    %236 = arith.divf %234, %235 : vector<2x64xf32>
    %237 = vector.extract_strided_slice %224 {offsets = [0, 128], sizes = [2, 64], strides = [1, 1]} : vector<2x256xf32> to vector<2x64xf32>
    %238 = math.tanh %237 : vector<2x64xf32>
    %239 = vector.extract_strided_slice %224 {offsets = [0, 192], sizes = [2, 64], strides = [1, 1]} : vector<2x256xf32> to vector<2x64xf32>
    %240 = arith.negf %239 : vector<2x64xf32>
    %241 = math.exp %240 : vector<2x64xf32>
    %cst_63 = arith.constant 1.000000e+00 : f32
    %242 = vector.broadcast %cst_63 : f32 to vector<2x64xf32>
    %243 = arith.addf %242, %241 : vector<2x64xf32>
    %244 = arith.divf %242, %243 : vector<2x64xf32>
    %245 = arith.mulf %236, %216 : vector<2x64xf32>
    %246 = arith.mulf %230, %238 : vector<2x64xf32>
    %247 = arith.addf %245, %246 : vector<2x64xf32>
    %248 = math.tanh %247 : vector<2x64xf32>
    %249 = arith.mulf %244, %248 : vector<2x64xf32>
    %c8_i32 = arith.constant 8 : i32
    %c0_64 = arith.constant 0 : index
    %c0_65 = arith.constant 0 : index
    %250 = vector.load %arg3[%c0_64, %c0_65] : memref<1x64xf32, #tpu.memory_space<vmem>>, vector<1x64xf32>
    %251 = vector.broadcast %250 : vector<1x64xf32> to vector<2x64xf32>
    %252 = arith.mulf %249, %251 : vector<2x64xf32>
    %cst_66 = arith.constant dense<0.000000e+00> : vector<2xf32>
    %253 = vector.multi_reduction <add>, %252, %cst_66 [1] : vector<2x64xf32> to vector<2xf32>
    %254 = vector.shape_cast %253 : vector<2xf32> to vector<2x1xf32>
    %c0_67 = arith.constant 0 : index
    %c0_68 = arith.constant 0 : index
    %255 = vector.load %arg4[%c0_67, %c0_68] : memref<1x1xf32, #tpu.memory_space<vmem>>, vector<1x1xf32>
    %256 = vector.broadcast %255 : vector<1x1xf32> to vector<2x1xf32>
    %257 = arith.addf %254, %256 : vector<2x1xf32>
    %c0_69 = arith.constant 0 : index
    %c0_70 = arith.constant 0 : index
    %258 = vector.load %arg5[%c0_69, %c0_70] : memref<2x1xf32, #tpu.memory_space<vmem>>, vector<2x1xf32>
    tpu.vector_store %arg5[%c0_69, %c0_70], %257 {strides = array<i32>} : memref<2x1xf32, #tpu.memory_space<vmem>>, vector<2x1xf32>,
    return
  }
  func.func @transform_0(%arg0: i32) -> (i32, i32, i32) {
    %c0_i32 = arith.constant 0 : i32
    %c0_i32_0 = arith.constant 0 : i32
    %c0_i32_1 = arith.constant 0 : i32
    return %c0_i32, %arg0, %c0_i32_0 : i32, i32, i32
  }
  func.func @transform_1(%arg0: i32) -> (i32, i32) {
    %c0_i32 = arith.constant 0 : i32
    %c0_i32_0 = arith.constant 0 : i32
    %c0_i32_1 = arith.constant 0 : i32
    return %c0_i32, %c0_i32_0 : i32, i32
  }
  func.func @transform_2(%arg0: i32) -> (i32, i32) {
    %c0_i32 = arith.constant 0 : i32
    %c0_i32_0 = arith.constant 0 : i32
    %c0_i32_1 = arith.constant 0 : i32
    return %c0_i32, %c0_i32_0 : i32, i32
  }
  func.func @transform_3(%arg0: i32) -> (i32, i32) {
    %c0_i32 = arith.constant 0 : i32
    %c0_i32_0 = arith.constant 0 : i32
    %c0_i32_1 = arith.constant 0 : i32
    return %c0_i32, %c0_i32_0 : i32, i32
  }
  func.func @transform_4(%arg0: i32) -> (i32, i32) {
    %c0_i32 = arith.constant 0 : i32
    %c0_i32_0 = arith.constant 0 : i32
    return %arg0, %c0_i32 : i32, i32
  }
}

</mosaic_0001>

<llo_original>
// kernel: tpu_custom_call.1
$region0: #{tpu_custom_call.1}
  #allocation0 [shape = 'u32[]', space=smem, size = 0x4, offset = 0x4, fixed_abs, tag = 'smem constant byte address 0x4 - core index']
  #allocation1 [shape = 'u32[144,128]{1,0:T(1,128)}', space=vmem, size = 0x12000, scoped, tag = 'internal scratch']
  #allocation2 [shape = 'f32[1,1]{1,0:T(1,128)S(1)}', space=vmem, size = 0x200, scoped, tag = 'scoped memory for tpu_custom_call.1']
  %s0 = inlined_call_operand.hbm [shape: f32[8,2,256], index: 0, kind: input, shape index: {}]
  %s1 = inlined_call_operand.hbm [shape: f32[64,256], index: 1, kind: input, shape index: {}]
  %s2 = inlined_call_operand.vmem [shape: f32[1,64], index: 2, kind: input, shape index: {}]
  %s3 = inlined_call_operand.<no memory space> [shape: f32[1,1], index: 3, kind: input, shape index: {}]
  %s4 = inlined_call_operand.vmem [shape: f32[2,1], index: 4, kind: output, shape index: {}]
  %s5 = sld [smem:[#allocation0]]
  $region34: #{tpu_custom_call.1} parent=0
    _
  %s7 = ssub.s32 1, %s5
  %s8 = scalar_select 0, %s7, %s5
  %v9 = vstv %s3
  %10 = vst [vmem:[#allocation2] sm:$0x1] %v9
  $region1: #{tpu_custom_call.1} parent=0
    #allocation3 [shape = 'u8[16384]{0}', space=vmem, size = 0x4000, scoped, tag = 'input window, operand 0, single buffered']
    #allocation4 [shape = 's32[1]{0}', space=sflag, size = 0x4, scoped, tag = 'scoped memory for tpu_custom_call.1']
    #allocation5 [shape = 'u8[65536]{0}', space=vmem, size = 0x10000, scoped, tag = 'input window, operand 1, single buffered']
    #allocation6 [shape = 's32[1]{0}', space=sflag, size = 0x4, scoped, tag = 'scoped memory for tpu_custom_call.1']
    %11 = vsyncpa [#allocation4], 0
    %12 = vsyncpa [#allocation6], 0
    // Predicated region
    $region2: #{tpu_custom_call.1} parent=1 // pred_check
      _
    $region3: #{tpu_custom_call.1} parent=1 // pred_check_branch
      %14 = sbr.rel (0) target = $region5
    $region4: #{tpu_custom_call.1} parent=1 // pred_region
      %s16 = ssub.s32 512, 512
      %17 = vsyncadd [#allocation4], %s16
      %s18 = sshll.u32 [#allocation3], 4
      %s19 = int_to_ptr.vmem [resolvable:$true] %s18
      %24 = dma.hbm_to_vmem [thread:$0]  %s0, 512, %s19, [#allocation4], 64, 64, 4
    $region5: #{tpu_custom_call.1} parent=1 // pred_fallthru
      _
    // Predicated region
    $region6: #{tpu_custom_call.1} parent=1 // pred_check
      _
    $region7: #{tpu_custom_call.1} parent=1 // pred_check_branch
      %26 = sbr.rel (0) target = $region9
    $region8: #{tpu_custom_call.1} parent=1 // pred_region
      %s28 = ssub.s32 2048, 2048
      %29 = vsyncadd [#allocation6], %s28
      %s30 = sshll.u32 [#allocation5], 4
      %s31 = int_to_ptr.vmem [resolvable:$true] %s30
      %36 = dma.hbm_to_vmem [thread:$0]  %s1, 2048, %s31, [#allocation6], 256, 256, 16
    $region9: #{tpu_custom_call.1} parent=1 // pred_fallthru
      _
    // Predicated region
    $region10: #{tpu_custom_call.1} parent=1 // pred_check
      _
    $region11: #{tpu_custom_call.1} parent=1 // pred_check_branch
      %38 = sbr.rel (0) target = $region13
    $region12: #{tpu_custom_call.1} parent=1 // pred_region
      _
    $region13: #{tpu_custom_call.1} parent=1 // pred_fallthru
      _
    // Predicated region
    $region14: #{tpu_custom_call.1} parent=1 // pred_check
      _
    $region15: #{tpu_custom_call.1} parent=1 // pred_check_branch
      %40 = sbr.rel (0) target = $region17
    $region16: #{tpu_custom_call.1} parent=1 // pred_region
      _
    $region17: #{tpu_custom_call.1} parent=1 // pred_fallthru
      _
    // Predicated region
    $region18: #{tpu_custom_call.1} parent=1 // pred_check
      _
    $region19: #{tpu_custom_call.1} parent=1 // pred_check_branch
      %42 = sbr.rel (0) target = $region21
    $region20: #{tpu_custom_call.1} parent=1 // pred_region
      %43 = dma.done [#allocation4], 512
    $region21: #{tpu_custom_call.1} parent=1 // pred_fallthru
      _
    // Predicated region
    $region22: #{tpu_custom_call.1} parent=1 // pred_check
      _
    $region23: #{tpu_custom_call.1} parent=1 // pred_check_branch
      %45 = sbr.rel (0) target = $region25
    $region24: #{tpu_custom_call.1} parent=1 // pred_region
      %46 = dma.done [#allocation6], 2048
    $region25: #{tpu_custom_call.1} parent=1 // pred_fallthru
      _
    %v47 = vld [vmem:[#allocation3] sm:$0xf]
    %v48 = vld [vmem:[#allocation5] sm:$0xff]
    %v49 = vld [vmem:[#allocation5 + $0x8] sm:$0xff]
    %v50 = vld [vmem:[#allocation5 + $0x10] sm:$0xff]
    %v51 = vld [vmem:[#allocation5 + $0x18] sm:$0xff]
    %v52 = vld [vmem:[#allocation5 + $0x20] sm:$0xff]
    %v53 = vld [vmem:[#allocation5 + $0x28] sm:$0xff]
    %v54 = vld [vmem:[#allocation5 + $0x30] sm:$0xff]
    %v55 = vld [vmem:[#allocation5 + $0x38] sm:$0xff]
    %v56 = vld [vmem:[#allocation5 + $0x40] sm:$0xff]
    %v57 = vld [vmem:[#allocation5 + $0x48] sm:$0xff]
    %v58 = vld [vmem:[#allocation5 + $0x50] sm:$0xff]
    %v59 = vld [vmem:[#allocation5 + $0x58] sm:$0xff]
    %v60 = vld [vmem:[#allocation5 + $0x60] sm:$0xff]
    %v61 = vld [vmem:[#allocation5 + $0x68] sm:$0xff]
    %v62 = vld [vmem:[#allocation5 + $0x70] sm:$0xff]
    %v63 = vld [vmem:[#allocation5 + $0x78] sm:$0xff]
    %vm64 = vcmask 523264
    %v66 = vsel %vm64, 0.0, 0
    %68 = vmatprep.subr.mxu0 0.0
    %69 = vmatpush1.msra.mxu0 0.0
    %70 = vmatprep.subr.mxu0 0.0
    %71 = vmatpush1.msra.mxu0 0.0
    %72 = vmatprep.subr.mxu0 0.0
    %73 = vmatpush1.msra.mxu0 0.0
    %74 = vmatprep.subr.mxu0 0.0
    %75 = vmatpush1.msra.mxu0 0.0
    %76 = vmatprep.subr.mxu0 0.0
    %77 = vmatpush1.msra.mxu0 0.0
    %78 = vmatprep.subr.mxu0 0.0
    %79 = vmatpush1.msra.mxu0 0.0
    %80 = vmatprep.subr.mxu0 0.0
    %81 = vmatpush1.msra.mxu0 0.0
    %82 = vmatprep.subr.mxu0 0.0
    %83 = vmatpush1.msra.mxu0 0.0
    %84 = vmatprep.subr.mxu0 %v63
    %85 = vmatpush1.msra.mxu0 %v62
    %86 = vmatprep.subr.mxu0 %v61
    %87 = vmatpush1.msra.mxu0 %v60
    %88 = vmatprep.subr.mxu0 %v59
    %89 = vmatpush1.msra.mxu0 %v58
    %90 = vmatprep.subr.mxu0 %v57
    %91 = vmatpush1.msra.mxu0 %v56
    %92 = vmatprep.subr.mxu0 %v55
    %93 = vmatpush1.msra.mxu0 %v54
    %94 = vmatprep.subr.mxu0 %v53
    %95 = vmatpush1.msra.mxu0 %v52
    %96 = vmatprep.subr.mxu0 %v51
    %97 = vmatpush1.msra.mxu0 %v50
    %98 = vmatprep.subr.mxu0 %v49
    %99 = vmatpush1.msra.mxu0 %v48
    %100 = vmatprep.subr.mxu0 0.0
    %101 = vmatpush2.msra.mxu0 0.0
    %102 = vmatprep.subr.mxu0 0.0
    %103 = vmatpush2.msra.mxu0 0.0
    %104 = vmatprep.subr.mxu0 0.0
    %105 = vmatpush2.msra.mxu0 0.0
    %106 = vmatprep.subr.mxu0 0.0
    %107 = vmatpush2.msra.mxu0 0.0
    %108 = vmatprep.subr.mxu0 0.0
    %109 = vmatpush2.msra.mxu0 0.0
    %110 = vmatprep.subr.mxu0 0.0
    %111 = vmatpush2.msra.mxu0 0.0
    %112 = vmatprep.subr.mxu0 0.0
    %113 = vmatpush2.msra.mxu0 0.0
    %114 = vmatprep.subr.mxu0 0.0
    %115 = vmatpush2.msra.mxu0 0.0
    %116 = vmatprep.subr.mxu0 0.0
    %117 = vmatpush2.msra.mxu0 0.0
    %118 = vmatprep.subr.mxu0 0.0
    %119 = vmatpush2.msra.mxu0 0.0
    %120 = vmatprep.subr.mxu0 0.0
    %121 = vmatpush2.msra.mxu0 0.0
    %122 = vmatprep.subr.mxu0 0.0
    %123 = vmatpush2.msra.mxu0 0.0
    %124 = vmatprep.subr.mxu0 0.0
    %125 = vmatpush2.msra.mxu0 0.0
    %126 = vmatprep.subr.mxu0 0.0
    %127 = vmatpush2.msra.mxu0 0.0
    %128 = vmatprep.subr.mxu0 0.0
    %129 = vmatpush2.msra.mxu0 0.0
    %130 = vmatprep.subr.mxu0 0.0
    %131 = vmatpush2.msra.mxu0 0.0
    %132 = vmatprep.mubr.f32.mxu0 0.0
    %133 = vmatmul.mubr.f32.gmra.mxu0 %v66
    %v134 = vpop.f32.mrf.mxu0
    %v135 = vadd.f32 0.0, %v134
    %v136 = vpop.f32.mrf.mxu0
    %v137 = vadd.f32 0.0, %v136
    %138 = vdwg.mxu0
    %v141 = vcombine.low %v135, %v137
    %v143 = vunpack.c.l.s4 1983009808
    %v144 = vunpack.c.0.s8 %v143
    %v145 = vlaneseq
    %v146 = vshrl.u32 %v145, 7
    %v147 = vsub.s32 %v144, %v146
    %v148 = vrot.slane %v141, %v147
    %v150 = vadd.f32 %v47, %v148
    %v151 = vxor.u32 %v150, 2147483648
    %v152 = vmul.f32 %v151, 1.442695
    %v153 = vpow.pop %v152
    %v154 = vadd.f32 %v153, 1.0
    %v155 = vrcp.pop %v154
    %v156 = vmul.f32 1.0, %v155
    %v158 = vrot.slane %v150, 2
    %v160 = vtanh.pop %v158
    %161 = vrot.lane.b32.xlu0 %v150, 64
    %v162 = vpop.permute.xlu0 %161
    %v163 = vrot.slane %v162, 2
    %v165 = vxor.u32 %v163, 2147483648
    %v166 = vmul.f32 %v165, 1.442695
    %v167 = vpow.pop %v166
    %v168 = vadd.f32 %v167, 1.0
    %v169 = vrcp.pop %v168
    %v170 = vmul.f32 1.0, %v169
    %v171 = vmul.f32 %v156, 0.0
    %v172 = vmul.f32 %v156, %v160
    %174 = vrot.lane.b32.xlu0 %v172, 64
    %v175 = vpop.permute.xlu0 %174
    %v177 = vadd.f32 %v171, %v175
    %v178 = vtanh.pop %v177
    %180 = vrot.lane.b32.xlu0 %v178, 64
    %v181 = vpop.permute.xlu0 %180
    %v183 = vmul.f32 %v170, %v181
    %s184 = scalar_lea.vmem [#allocation3], 4
    %v185 = vld [vmem:[%s184] sm:$0xf]
    %v187 = vsel %vm64, %v183, 0
    %189 = vmatprep.subr.mxu0 0.0
    %190 = vmatpush1.msra.mxu0 0.0
    %191 = vmatprep.subr.mxu0 0.0
    %192 = vmatpush1.msra.mxu0 0.0
    %193 = vmatprep.subr.mxu0 0.0
    %194 = vmatpush1.msra.mxu0 0.0
    %195 = vmatprep.subr.mxu0 0.0
    %196 = vmatpush1.msra.mxu0 0.0
    %197 = vmatprep.subr.mxu0 0.0
    %198 = vmatpush1.msra.mxu0 0.0
    %199 = vmatprep.subr.mxu0 0.0
    %200 = vmatpush1.msra.mxu0 0.0
    %201 = vmatprep.subr.mxu0 0.0
    %202 = vmatpush1.msra.mxu0 0.0
    %203 = vmatprep.subr.mxu0 0.0
    %204 = vmatpush1.msra.mxu0 0.0
    %205 = vmatprep.subr.mxu0 %v63
    %206 = vmatpush1.msra.mxu0 %v62
    %207 = vmatprep.subr.mxu0 %v61
    %208 = vmatpush1.msra.mxu0 %v60
    %209 = vmatprep.subr.mxu0 %v59
    %210 = vmatpush1.msra.mxu0 %v58
    %211 = vmatprep.subr.mxu0 %v57
    %212 = vmatpush1.msra.mxu0 %v56
    %213 = vmatprep.subr.mxu0 %v55
    %214 = vmatpush1.msra.mxu0 %v54
    %215 = vmatprep.subr.mxu0 %v53
    %216 = vmatpush1.msra.mxu0 %v52
    %217 = vmatprep.subr.mxu0 %v51
    %218 = vmatpush1.msra.mxu0 %v50
    %219 = vmatprep.subr.mxu0 %v49
    %220 = vmatpush1.msra.mxu0 %v48
    %221 = vmatprep.subr.mxu0 0.0
    %222 = vmatpush2.msra.mxu0 0.0
    %223 = vmatprep.subr.mxu0 0.0
    %224 = vmatpush2.msra.mxu0 0.0
    %225 = vmatprep.subr.mxu0 0.0
    %226 = vmatpush2.msra.mxu0 0.0
    %227 = vmatprep.subr.mxu0 0.0
    %228 = vmatpush2.msra.mxu0 0.0
    %229 = vmatprep.subr.mxu0 0.0
    %230 = vmatpush2.msra.mxu0 0.0
    %231 = vmatprep.subr.mxu0 0.0
    %232 = vmatpush2.msra.mxu0 0.0
    %233 = vmatprep.subr.mxu0 0.0
    %234 = vmatpush2.msra.mxu0 0.0
    %235 = vmatprep.subr.mxu0 0.0
    %236 = vmatpush2.msra.mxu0 0.0
    %237 = vmatprep.subr.mxu0 0.0
    %238 = vmatpush2.msra.mxu0 0.0
    %239 = vmatprep.subr.mxu0 0.0
    %240 = vmatpush2.msra.mxu0 0.0
    %241 = vmatprep.subr.mxu0 0.0
    %242 = vmatpush2.msra.mxu0 0.0
    %243 = vmatprep.subr.mxu0 0.0
    %244 = vmatpush2.msra.mxu0 0.0
    %245 = vmatprep.subr.mxu0 0.0
    %246 = vmatpush2.msra.mxu0 0.0
    %247 = vmatprep.subr.mxu0 0.0
    %248 = vmatpush2.msra.mxu0 0.0
    %249 = vmatprep.subr.mxu0 0.0
    %250 = vmatpush2.msra.mxu0 0.0
    %251 = vmatprep.subr.mxu0 0.0
    %252 = vmatpush2.msra.mxu0 0.0
    %253 = vmatprep.mubr.f32.mxu0 0.0
    %254 = vmatmul.mubr.f32.gmra.mxu0 %v187
    %v255 = vpop.f32.mrf.mxu0
    %v256 = vadd.f32 0.0, %v255
    %v257 = vpop.f32.mrf.mxu0
    %v258 = vadd.f32 0.0, %v257
    %259 = vdwg.mxu0
    %v262 = vcombine.low %v256, %v258
    %v264 = vunpack.c.l.s4 1983009808
    %v265 = vunpack.c.0.s8 %v264
    %v266 = vlaneseq
    %v267 = vshrl.u32 %v266, 7
    %v268 = vsub.s32 %v265, %v267
    %v269 = vrot.slane %v262, %v268
    %v271 = vadd.f32 %v185, %v269
    %v272 = vxor.u32 %v271, 2147483648
    %v273 = vmul.f32 %v272, 1.442695
    %v274 = vpow.pop %v273
    %v275 = vadd.f32 %v274, 1.0
    %v276 = vrcp.pop %v275
    %v277 = vmul.f32 1.0, %v276
    %v279 = vrot.slane %v271, 2
    %v281 = vtanh.pop %v279
    %282 = vrot.lane.b32.xlu0 %v271, 64
    %v283 = vpop.permute.xlu0 %282
    %v284 = vrot.slane %v283, 2
    %v286 = vxor.u32 %v284, 2147483648
    %v287 = vmul.f32 %v286, 1.442695
    %v288 = vpow.pop %v287
    %v289 = vadd.f32 %v288, 1.0
    %v290 = vrcp.pop %v289
    %v291 = vmul.f32 1.0, %v290
    %v292 = vmul.f32 %v277, %v177
    %v293 = vmul.f32 %v277, %v281
    %295 = vrot.lane.b32.xlu0 %v293, 64
    %v296 = vpop.permute.xlu0 %295
    %v298 = vadd.f32 %v292, %v296
    %v299 = vtanh.pop %v298
    %301 = vrot.lane.b32.xlu0 %v299, 64
    %v302 = vpop.permute.xlu0 %301
    %v304 = vmul.f32 %v291, %v302
    %s305 = scalar_lea.vmem [#allocation3], 8
    %v306 = vld [vmem:[%s305] sm:$0xf]
    %v308 = vsel %vm64, %v304, 0
    %310 = vmatprep.subr.mxu0 0.0
    %311 = vmatpush1.msra.mxu0 0.0
    %312 = vmatprep.subr.mxu0 0.0
    %313 = vmatpush1.msra.mxu0 0.0
    %314 = vmatprep.subr.mxu0 0.0
    %315 = vmatpush1.msra.mxu0 0.0
    %316 = vmatprep.subr.mxu0 0.0
    %317 = vmatpush1.msra.mxu0 0.0
    %318 = vmatprep.subr.mxu0 0.0
    %319 = vmatpush1.msra.mxu0 0.0
    %320 = vmatprep.subr.mxu0 0.0
    %321 = vmatpush1.msra.mxu0 0.0
    %322 = vmatprep.subr.mxu0 0.0
    %323 = vmatpush1.msra.mxu0 0.0
    %324 = vmatprep.subr.mxu0 0.0
    %325 = vmatpush1.msra.mxu0 0.0
    %326 = vmatprep.subr.mxu0 %v63
    %327 = vmatpush1.msra.mxu0 %v62
    %328 = vmatprep.subr.mxu0 %v61
    %329 = vmatpush1.msra.mxu0 %v60
    %330 = vmatprep.subr.mxu0 %v59
    %331 = vmatpush1.msra.mxu0 %v58
    %332 = vmatprep.subr.mxu0 %v57
    %333 = vmatpush1.msra.mxu0 %v56
    %334 = vmatprep.subr.mxu0 %v55
    %335 = vmatpush1.msra.mxu0 %v54
    %336 = vmatprep.subr.mxu0 %v53
    %337 = vmatpush1.msra.mxu0 %v52
    %338 = vmatprep.subr.mxu0 %v51
    %339 = vmatpush1.msra.mxu0 %v50
    %340 = vmatprep.subr.mxu0 %v49
    %341 = vmatpush1.msra.mxu0 %v48
    %342 = vmatprep.subr.mxu0 0.0
    %343 = vmatpush2.msra.mxu0 0.0
    %344 = vmatprep.subr.mxu0 0.0
    %345 = vmatpush2.msra.mxu0 0.0
    %346 = vmatprep.subr.mxu0 0.0
    %347 = vmatpush2.msra.mxu0 0.0
    %348 = vmatprep.subr.mxu0 0.0
    %349 = vmatpush2.msra.mxu0 0.0
    %350 = vmatprep.subr.mxu0 0.0
    %351 = vmatpush2.msra.mxu0 0.0
    %352 = vmatprep.subr.mxu0 0.0
    %353 = vmatpush2.msra.mxu0 0.0
    %354 = vmatprep.subr.mxu0 0.0
    %355 = vmatpush2.msra.mxu0 0.0
    %356 = vmatprep.subr.mxu0 0.0
    %357 = vmatpush2.msra.mxu0 0.0
    %358 = vmatprep.subr.mxu0 0.0
    %359 = vmatpush2.msra.mxu0 0.0
    %360 = vmatprep.subr.mxu0 0.0
    %361 = vmatpush2.msra.mxu0 0.0
    %362 = vmatprep.subr.mxu0 0.0
    %363 = vmatpush2.msra.mxu0 0.0
    %364 = vmatprep.subr.mxu0 0.0
    %365 = vmatpush2.msra.mxu0 0.0
    %366 = vmatprep.subr.mxu0 0.0
    %367 = vmatpush2.msra.mxu0 0.0
    %368 = vmatprep.subr.mxu0 0.0
    %369 = vmatpush2.msra.mxu0 0.0
    %370 = vmatprep.subr.mxu0 0.0
    %371 = vmatpush2.msra.mxu0 0.0
    %372 = vmatprep.subr.mxu0 0.0
    %373 = vmatpush2.msra.mxu0 0.0
    %374 = vmatprep.mubr.f32.mxu0 0.0
    %375 = vmatmul.mubr.f32.gmra.mxu0 %v308
    %v376 = vpop.f32.mrf.mxu0
    %v377 = vadd.f32 0.0, %v376
    %v378 = vpop.f32.mrf.mxu0
    %v379 = vadd.f32 0.0, %v378
    %380 = vdwg.mxu0
    %v383 = vcombine.low %v377, %v379
    %v385 = vunpack.c.l.s4 1983009808
    %v386 = vunpack.c.0.s8 %v385
    %v387 = vlaneseq
    %v388 = vshrl.u32 %v387, 7
    %v389 = vsub.s32 %v386, %v388
    %v390 = vrot.slane %v383, %v389
    %v392 = vadd.f32 %v306, %v390
    %v393 = vxor.u32 %v392, 2147483648
    %v394 = vmul.f32 %v393, 1.442695
    %v395 = vpow.pop %v394
    %v396 = vadd.f32 %v395, 1.0
    %v397 = vrcp.pop %v396
    %v398 = vmul.f32 1.0, %v397
    %v400 = vrot.slane %v392, 2
    %v402 = vtanh.pop %v400
    %403 = vrot.lane.b32.xlu0 %v392, 64
    %v404 = vpop.permute.xlu0 %403
    %v405 = vrot.slane %v404, 2
    %v407 = vxor.u32 %v405, 2147483648
    %v408 = vmul.f32 %v407, 1.442695
    %v409 = vpow.pop %v408
    %v410 = vadd.f32 %v409, 1.0
    %v411 = vrcp.pop %v410
    %v412 = vmul.f32 1.0, %v411
    %v413 = vmul.f32 %v398, %v298
    %v414 = vmul.f32 %v398, %v402
    %416 = vrot.lane.b32.xlu0 %v414, 64
    %v417 = vpop.permute.xlu0 %416
    %v419 = vadd.f32 %v413, %v417
    %v420 = vtanh.pop %v419
    %422 = vrot.lane.b32.xlu0 %v420, 64
    %v423 = vpop.permute.xlu0 %422
    %v425 = vmul.f32 %v412, %v423
    %s426 = scalar_lea.vmem [#allocation3], 12
    %v427 = vld [vmem:[%s426] sm:$0xf]
    %v429 = vsel %vm64, %v425, 0
    %431 = vmatprep.subr.mxu0 0.0
    %432 = vmatpush1.msra.mxu0 0.0
    %433 = vmatprep.subr.mxu0 0.0
    %434 = vmatpush1.msra.mxu0 0.0
    %435 = vmatprep.subr.mxu0 0.0
    %436 = vmatpush1.msra.mxu0 0.0
    %437 = vmatprep.subr.mxu0 0.0
    %438 = vmatpush1.msra.mxu0 0.0
    %439 = vmatprep.subr.mxu0 0.0
    %440 = vmatpush1.msra.mxu0 0.0
    %441 = vmatprep.subr.mxu0 0.0
    %442 = vmatpush1.msra.mxu0 0.0
    %443 = vmatprep.subr.mxu0 0.0
    %444 = vmatpush1.msra.mxu0 0.0
    %445 = vmatprep.subr.mxu0 0.0
    %446 = vmatpush1.msra.mxu0 0.0
    %447 = vmatprep.subr.mxu0 %v63
    %448 = vmatpush1.msra.mxu0 %v62
    %449 = vmatprep.subr.mxu0 %v61
    %450 = vmatpush1.msra.mxu0 %v60
    %451 = vmatprep.subr.mxu0 %v59
    %452 = vmatpush1.msra.mxu0 %v58
    %453 = vmatprep.subr.mxu0 %v57
    %454 = vmatpush1.msra.mxu0 %v56
    %455 = vmatprep.subr.mxu0 %v55
    %456 = vmatpush1.msra.mxu0 %v54
    %457 = vmatprep.subr.mxu0 %v53
    %458 = vmatpush1.msra.mxu0 %v52
    %459 = vmatprep.subr.mxu0 %v51
    %460 = vmatpush1.msra.mxu0 %v50
    %461 = vmatprep.subr.mxu0 %v49
    %462 = vmatpush1.msra.mxu0 %v48
    %463 = vmatprep.subr.mxu0 0.0
    %464 = vmatpush2.msra.mxu0 0.0
    %465 = vmatprep.subr.mxu0 0.0
    %466 = vmatpush2.msra.mxu0 0.0
    %467 = vmatprep.subr.mxu0 0.0
    %468 = vmatpush2.msra.mxu0 0.0
    %469 = vmatprep.subr.mxu0 0.0
    %470 = vmatpush2.msra.mxu0 0.0
    %471 = vmatprep.subr.mxu0 0.0
    %472 = vmatpush2.msra.mxu0 0.0
    %473 = vmatprep.subr.mxu0 0.0
    %474 = vmatpush2.msra.mxu0 0.0
    %475 = vmatprep.subr.mxu0 0.0
    %476 = vmatpush2.msra.mxu0 0.0
    %477 = vmatprep.subr.mxu0 0.0
    %478 = vmatpush2.msra.mxu0 0.0
    %479 = vmatprep.subr.mxu0 0.0
    %480 = vmatpush2.msra.mxu0 0.0
    %481 = vmatprep.subr.mxu0 0.0
    %482 = vmatpush2.msra.mxu0 0.0
    %483 = vmatprep.subr.mxu0 0.0
    %484 = vmatpush2.msra.mxu0 0.0
    %485 = vmatprep.subr.mxu0 0.0
    %486 = vmatpush2.msra.mxu0 0.0
    %487 = vmatprep.subr.mxu0 0.0
    %488 = vmatpush2.msra.mxu0 0.0
    %489 = vmatprep.subr.mxu0 0.0
    %490 = vmatpush2.msra.mxu0 0.0
    %491 = vmatprep.subr.mxu0 0.0
    %492 = vmatpush2.msra.mxu0 0.0
    %493 = vmatprep.subr.mxu0 0.0
    %494 = vmatpush2.msra.mxu0 0.0
    %495 = vmatprep.mubr.f32.mxu0 0.0
    %496 = vmatmul.mubr.f32.gmra.mxu0 %v429
    %v497 = vpop.f32.mrf.mxu0
    %v498 = vadd.f32 0.0, %v497
    %v499 = vpop.f32.mrf.mxu0
    %v500 = vadd.f32 0.0, %v499
    %501 = vdwg.mxu0
    %v504 = vcombine.low %v498, %v500
    %v506 = vunpack.c.l.s4 1983009808
    %v507 = vunpack.c.0.s8 %v506
    %v508 = vlaneseq
    %v509 = vshrl.u32 %v508, 7
    %v510 = vsub.s32 %v507, %v509
    %v511 = vrot.slane %v504, %v510
    %v513 = vadd.f32 %v427, %v511
    %v514 = vxor.u32 %v513, 2147483648
    %v515 = vmul.f32 %v514, 1.442695
    %v516 = vpow.pop %v515
    %v517 = vadd.f32 %v516, 1.0
    %v518 = vrcp.pop %v517
    %v519 = vmul.f32 1.0, %v518
    %v521 = vrot.slane %v513, 2
    %v523 = vtanh.pop %v521
    %524 = vrot.lane.b32.xlu0 %v513, 64
    %v525 = vpop.permute.xlu0 %524
    %v526 = vrot.slane %v525, 2
    %v528 = vxor.u32 %v526, 2147483648
    %v529 = vmul.f32 %v528, 1.442695
    %v530 = vpow.pop %v529
    %v531 = vadd.f32 %v530, 1.0
    %v532 = vrcp.pop %v531
    %v533 = vmul.f32 1.0, %v532
    %v534 = vmul.f32 %v519, %v419
    %v535 = vmul.f32 %v519, %v523
    %537 = vrot.lane.b32.xlu0 %v535, 64
    %v538 = vpop.permute.xlu0 %537
    %v540 = vadd.f32 %v534, %v538
    %v541 = vtanh.pop %v540
    %543 = vrot.lane.b32.xlu0 %v541, 64
    %v544 = vpop.permute.xlu0 %543
    %v546 = vmul.f32 %v533, %v544
    %s547 = scalar_lea.vmem [#allocation3], 16
    %v548 = vld [vmem:[%s547] sm:$0xf]
    %v550 = vsel %vm64, %v546, 0
    %552 = vmatprep.subr.mxu0 0.0
    %553 = vmatpush1.msra.mxu0 0.0
    %554 = vmatprep.subr.mxu0 0.0
    %555 = vmatpush1.msra.mxu0 0.0
    %556 = vmatprep.subr.mxu0 0.0
    %557 = vmatpush1.msra.mxu0 0.0
    %558 = vmatprep.subr.mxu0 0.0
    %559 = vmatpush1.msra.mxu0 0.0
    %560 = vmatprep.subr.mxu0 0.0
    %561 = vmatpush1.msra.mxu0 0.0
    %562 = vmatprep.subr.mxu0 0.0
    %563 = vmatpush1.msra.mxu0 0.0
    %564 = vmatprep.subr.mxu0 0.0
    %565 = vmatpush1.msra.mxu0 0.0
    %566 = vmatprep.subr.mxu0 0.0
    %567 = vmatpush1.msra.mxu0 0.0
    %568 = vmatprep.subr.mxu0 %v63
    %569 = vmatpush1.msra.mxu0 %v62
    %570 = vmatprep.subr.mxu0 %v61
    %571 = vmatpush1.msra.mxu0 %v60
    %572 = vmatprep.subr.mxu0 %v59
    %573 = vmatpush1.msra.mxu0 %v58
    %574 = vmatprep.subr.mxu0 %v57
    %575 = vmatpush1.msra.mxu0 %v56
    %576 = vmatprep.subr.mxu0 %v55
    %577 = vmatpush1.msra.mxu0 %v54
    %578 = vmatprep.subr.mxu0 %v53
    %579 = vmatpush1.msra.mxu0 %v52
    %580 = vmatprep.subr.mxu0 %v51
    %581 = vmatpush1.msra.mxu0 %v50
    %582 = vmatprep.subr.mxu0 %v49
    %583 = vmatpush1.msra.mxu0 %v48
    %584 = vmatprep.subr.mxu0 0.0
    %585 = vmatpush2.msra.mxu0 0.0
    %586 = vmatprep.subr.mxu0 0.0
    %587 = vmatpush2.msra.mxu0 0.0
    %588 = vmatprep.subr.mxu0 0.0
    %589 = vmatpush2.msra.mxu0 0.0
    %590 = vmatprep.subr.mxu0 0.0
    %591 = vmatpush2.msra.mxu0 0.0
    %592 = vmatprep.subr.mxu0 0.0
    %593 = vmatpush2.msra.mxu0 0.0
    %594 = vmatprep.subr.mxu0 0.0
    %595 = vmatpush2.msra.mxu0 0.0
    %596 = vmatprep.subr.mxu0 0.0
    %597 = vmatpush2.msra.mxu0 0.0
    %598 = vmatprep.subr.mxu0 0.0
    %599 = vmatpush2.msra.mxu0 0.0
    %600 = vmatprep.subr.mxu0 0.0
    %601 = vmatpush2.msra.mxu0 0.0
    %602 = vmatprep.subr.mxu0 0.0
    %603 = vmatpush2.msra.mxu0 0.0
    %604 = vmatprep.subr.mxu0 0.0
    %605 = vmatpush2.msra.mxu0 0.0
    %606 = vmatprep.subr.mxu0 0.0
    %607 = vmatpush2.msra.mxu0 0.0
    %608 = vmatprep.subr.mxu0 0.0
    %609 = vmatpush2.msra.mxu0 0.0
    %610 = vmatprep.subr.mxu0 0.0
    %611 = vmatpush2.msra.mxu0 0.0
    %612 = vmatprep.subr.mxu0 0.0
    %613 = vmatpush2.msra.mxu0 0.0
    %614 = vmatprep.subr.mxu0 0.0
    %615 = vmatpush2.msra.mxu0 0.0
    %616 = vmatprep.mubr.f32.mxu0 0.0
    %617 = vmatmul.mubr.f32.gmra.mxu0 %v550
    %v618 = vpop.f32.mrf.mxu0
    %v619 = vadd.f32 0.0, %v618
    %v620 = vpop.f32.mrf.mxu0
    %v621 = vadd.f32 0.0, %v620
    %622 = vdwg.mxu0
    %v625 = vcombine.low %v619, %v621
    %v627 = vunpack.c.l.s4 1983009808
    %v628 = vunpack.c.0.s8 %v627
    %v629 = vlaneseq
    %v630 = vshrl.u32 %v629, 7
    %v631 = vsub.s32 %v628, %v630
    %v632 = vrot.slane %v625, %v631
    %v634 = vadd.f32 %v548, %v632
    %v635 = vxor.u32 %v634, 2147483648
    %v636 = vmul.f32 %v635, 1.442695
    %v637 = vpow.pop %v636
    %v638 = vadd.f32 %v637, 1.0
    %v639 = vrcp.pop %v638
    %v640 = vmul.f32 1.0, %v639
    %v642 = vrot.slane %v634, 2
    %v644 = vtanh.pop %v642
    %645 = vrot.lane.b32.xlu0 %v634, 64
    %v646 = vpop.permute.xlu0 %645
    %v647 = vrot.slane %v646, 2
    %v649 = vxor.u32 %v647, 2147483648
    %v650 = vmul.f32 %v649, 1.442695
    %v651 = vpow.pop %v650
    %v652 = vadd.f32 %v651, 1.0
    %v653 = vrcp.pop %v652
    %v654 = vmul.f32 1.0, %v653
    %v655 = vmul.f32 %v640, %v540
    %v656 = vmul.f32 %v640, %v644
    %658 = vrot.lane.b32.xlu0 %v656, 64
    %v659 = vpop.permute.xlu0 %658
    %v661 = vadd.f32 %v655, %v659
    %v662 = vtanh.pop %v661
    %664 = vrot.lane.b32.xlu0 %v662, 64
    %v665 = vpop.permute.xlu0 %664
    %v667 = vmul.f32 %v654, %v665
    %s668 = scalar_lea.vmem [#allocation3], 20
    %v669 = vld [vmem:[%s668] sm:$0xf]
    %v671 = vsel %vm64, %v667, 0
    %673 = vmatprep.subr.mxu0 0.0
    %674 = vmatpush1.msra.mxu0 0.0
    %675 = vmatprep.subr.mxu0 0.0
    %676 = vmatpush1.msra.mxu0 0.0
    %677 = vmatprep.subr.mxu0 0.0
    %678 = vmatpush1.msra.mxu0 0.0
    %679 = vmatprep.subr.mxu0 0.0
    %680 = vmatpush1.msra.mxu0 0.0
    %681 = vmatprep.subr.mxu0 0.0
    %682 = vmatpush1.msra.mxu0 0.0
    %683 = vmatprep.subr.mxu0 0.0
    %684 = vmatpush1.msra.mxu0 0.0
    %685 = vmatprep.subr.mxu0 0.0
    %686 = vmatpush1.msra.mxu0 0.0
    %687 = vmatprep.subr.mxu0 0.0
    %688 = vmatpush1.msra.mxu0 0.0
    %689 = vmatprep.subr.mxu0 %v63
    %690 = vmatpush1.msra.mxu0 %v62
    %691 = vmatprep.subr.mxu0 %v61
    %692 = vmatpush1.msra.mxu0 %v60
    %693 = vmatprep.subr.mxu0 %v59
    %694 = vmatpush1.msra.mxu0 %v58
    %695 = vmatprep.subr.mxu0 %v57
    %696 = vmatpush1.msra.mxu0 %v56
    %697 = vmatprep.subr.mxu0 %v55
    %698 = vmatpush1.msra.mxu0 %v54
    %699 = vmatprep.subr.mxu0 %v53
    %700 = vmatpush1.msra.mxu0 %v52
    %701 = vmatprep.subr.mxu0 %v51
    %702 = vmatpush1.msra.mxu0 %v50
    %703 = vmatprep.subr.mxu0 %v49
    %704 = vmatpush1.msra.mxu0 %v48
    %705 = vmatprep.subr.mxu0 0.0
    %706 = vmatpush2.msra.mxu0 0.0
    %707 = vmatprep.subr.mxu0 0.0
    %708 = vmatpush2.msra.mxu0 0.0
    %709 = vmatprep.subr.mxu0 0.0
    %710 = vmatpush2.msra.mxu0 0.0
    %711 = vmatprep.subr.mxu0 0.0
    %712 = vmatpush2.msra.mxu0 0.0
    %713 = vmatprep.subr.mxu0 0.0
    %714 = vmatpush2.msra.mxu0 0.0
    %715 = vmatprep.subr.mxu0 0.0
    %716 = vmatpush2.msra.mxu0 0.0
    %717 = vmatprep.subr.mxu0 0.0
    %718 = vmatpush2.msra.mxu0 0.0
    %719 = vmatprep.subr.mxu0 0.0
    %720 = vmatpush2.msra.mxu0 0.0
    %721 = vmatprep.subr.mxu0 0.0
    %722 = vmatpush2.msra.mxu0 0.0
    %723 = vmatprep.subr.mxu0 0.0
    %724 = vmatpush2.msra.mxu0 0.0
    %725 = vmatprep.subr.mxu0 0.0
    %726 = vmatpush2.msra.mxu0 0.0
    %727 = vmatprep.subr.mxu0 0.0
    %728 = vmatpush2.msra.mxu0 0.0
    %729 = vmatprep.subr.mxu0 0.0
    %730 = vmatpush2.msra.mxu0 0.0
    %731 = vmatprep.subr.mxu0 0.0
    %732 = vmatpush2.msra.mxu0 0.0
    %733 = vmatprep.subr.mxu0 0.0
    %734 = vmatpush2.msra.mxu0 0.0
    %735 = vmatprep.subr.mxu0 0.0
    %736 = vmatpush2.msra.mxu0 0.0
    %737 = vmatprep.mubr.f32.mxu0 0.0
    %738 = vmatmul.mubr.f32.gmra.mxu0 %v671
    %v739 = vpop.f32.mrf.mxu0
    %v740 = vadd.f32 0.0, %v739
    %v741 = vpop.f32.mrf.mxu0
    %v742 = vadd.f32 0.0, %v741
    %743 = vdwg.mxu0
    %v746 = vcombine.low %v740, %v742
    %v748 = vunpack.c.l.s4 1983009808
    %v749 = vunpack.c.0.s8 %v748
    %v750 = vlaneseq
    %v751 = vshrl.u32 %v750, 7
    %v752 = vsub.s32 %v749, %v751
    %v753 = vrot.slane %v746, %v752
    %v755 = vadd.f32 %v669, %v753
    %v756 = vxor.u32 %v755, 2147483648
    %v757 = vmul.f32 %v756, 1.442695
    %v758 = vpow.pop %v757
    %v759 = vadd.f32 %v758, 1.0
    %v760 = vrcp.pop %v759
    %v761 = vmul.f32 1.0, %v760
    %v763 = vrot.slane %v755, 2
    %v765 = vtanh.pop %v763
    %766 = vrot.lane.b32.xlu0 %v755, 64
    %v767 = vpop.permute.xlu0 %766
    %v768 = vrot.slane %v767, 2
    %v770 = vxor.u32 %v768, 2147483648
    %v771 = vmul.f32 %v770, 1.442695
    %v772 = vpow.pop %v771
    %v773 = vadd.f32 %v772, 1.0
    %v774 = vrcp.pop %v773
    %v775 = vmul.f32 1.0, %v774
    %v776 = vmul.f32 %v761, %v661
    %v777 = vmul.f32 %v761, %v765
    %779 = vrot.lane.b32.xlu0 %v777, 64
    %v780 = vpop.permute.xlu0 %779
    %v782 = vadd.f32 %v776, %v780
    %v783 = vtanh.pop %v782
    %785 = vrot.lane.b32.xlu0 %v783, 64
    %v786 = vpop.permute.xlu0 %785
    %v788 = vmul.f32 %v775, %v786
    %s789 = scalar_lea.vmem [#allocation3], 24
    %v790 = vld [vmem:[%s789] sm:$0xf]
    %v792 = vsel %vm64, %v788, 0
    %794 = vmatprep.subr.mxu0 0.0
    %795 = vmatpush1.msra.mxu0 0.0
    %796 = vmatprep.subr.mxu0 0.0
    %797 = vmatpush1.msra.mxu0 0.0
    %798 = vmatprep.subr.mxu0 0.0
    %799 = vmatpush1.msra.mxu0 0.0
    %800 = vmatprep.subr.mxu0 0.0
    %801 = vmatpush1.msra.mxu0 0.0
    %802 = vmatprep.subr.mxu0 0.0
    %803 = vmatpush1.msra.mxu0 0.0
    %804 = vmatprep.subr.mxu0 0.0
    %805 = vmatpush1.msra.mxu0 0.0
    %806 = vmatprep.subr.mxu0 0.0
    %807 = vmatpush1.msra.mxu0 0.0
    %808 = vmatprep.subr.mxu0 0.0
    %809 = vmatpush1.msra.mxu0 0.0
    %810 = vmatprep.subr.mxu0 %v63
    %811 = vmatpush1.msra.mxu0 %v62
    %812 = vmatprep.subr.mxu0 %v61
    %813 = vmatpush1.msra.mxu0 %v60
    %814 = vmatprep.subr.mxu0 %v59
    %815 = vmatpush1.msra.mxu0 %v58
    %816 = vmatprep.subr.mxu0 %v57
    %817 = vmatpush1.msra.mxu0 %v56
    %818 = vmatprep.subr.mxu0 %v55
    %819 = vmatpush1.msra.mxu0 %v54
    %820 = vmatprep.subr.mxu0 %v53
    %821 = vmatpush1.msra.mxu0 %v52
    %822 = vmatprep.subr.mxu0 %v51
    %823 = vmatpush1.msra.mxu0 %v50
    %824 = vmatprep.subr.mxu0 %v49
    %825 = vmatpush1.msra.mxu0 %v48
    %826 = vmatprep.subr.mxu0 0.0
    %827 = vmatpush2.msra.mxu0 0.0
    %828 = vmatprep.subr.mxu0 0.0
    %829 = vmatpush2.msra.mxu0 0.0
    %830 = vmatprep.subr.mxu0 0.0
    %831 = vmatpush2.msra.mxu0 0.0
    %832 = vmatprep.subr.mxu0 0.0
    %833 = vmatpush2.msra.mxu0 0.0
    %834 = vmatprep.subr.mxu0 0.0
    %835 = vmatpush2.msra.mxu0 0.0
    %836 = vmatprep.subr.mxu0 0.0
    %837 = vmatpush2.msra.mxu0 0.0
    %838 = vmatprep.subr.mxu0 0.0
    %839 = vmatpush2.msra.mxu0 0.0
    %840 = vmatprep.subr.mxu0 0.0
    %841 = vmatpush2.msra.mxu0 0.0
    %842 = vmatprep.subr.mxu0 0.0
    %843 = vmatpush2.msra.mxu0 0.0
    %844 = vmatprep.subr.mxu0 0.0
    %845 = vmatpush2.msra.mxu0 0.0
    %846 = vmatprep.subr.mxu0 0.0
    %847 = vmatpush2.msra.mxu0 0.0
    %848 = vmatprep.subr.mxu0 0.0
    %849 = vmatpush2.msra.mxu0 0.0
    %850 = vmatprep.subr.mxu0 0.0
    %851 = vmatpush2.msra.mxu0 0.0
    %852 = vmatprep.subr.mxu0 0.0
    %853 = vmatpush2.msra.mxu0 0.0
    %854 = vmatprep.subr.mxu0 0.0
    %855 = vmatpush2.msra.mxu0 0.0
    %856 = vmatprep.subr.mxu0 0.0
    %857 = vmatpush2.msra.mxu0 0.0
    %858 = vmatprep.mubr.f32.mxu0 0.0
    %859 = vmatmul.mubr.f32.gmra.mxu0 %v792
    %v860 = vpop.f32.mrf.mxu0
    %v861 = vadd.f32 0.0, %v860
    %v862 = vpop.f32.mrf.mxu0
    %v863 = vadd.f32 0.0, %v862
    %864 = vdwg.mxu0
    %v867 = vcombine.low %v861, %v863
    %v869 = vunpack.c.l.s4 1983009808
    %v870 = vunpack.c.0.s8 %v869
    %v871 = vlaneseq
    %v872 = vshrl.u32 %v871, 7
    %v873 = vsub.s32 %v870, %v872
    %v874 = vrot.slane %v867, %v873
    %v876 = vadd.f32 %v790, %v874
    %v877 = vxor.u32 %v876, 2147483648
    %v878 = vmul.f32 %v877, 1.442695
    %v879 = vpow.pop %v878
    %v880 = vadd.f32 %v879, 1.0
    %v881 = vrcp.pop %v880
    %v882 = vmul.f32 1.0, %v881
    %v884 = vrot.slane %v876, 2
    %v886 = vtanh.pop %v884
    %887 = vrot.lane.b32.xlu0 %v876, 64
    %v888 = vpop.permute.xlu0 %887
    %v889 = vrot.slane %v888, 2
    %v891 = vxor.u32 %v889, 2147483648
    %v892 = vmul.f32 %v891, 1.442695
    %v893 = vpow.pop %v892
    %v894 = vadd.f32 %v893, 1.0
    %v895 = vrcp.pop %v894
    %v896 = vmul.f32 1.0, %v895
    %v897 = vmul.f32 %v882, %v782
    %v898 = vmul.f32 %v882, %v886
    %900 = vrot.lane.b32.xlu0 %v898, 64
    %v901 = vpop.permute.xlu0 %900
    %v903 = vadd.f32 %v897, %v901
    %v904 = vtanh.pop %v903
    %906 = vrot.lane.b32.xlu0 %v904, 64
    %v907 = vpop.permute.xlu0 %906
    %v909 = vmul.f32 %v896, %v907
    %s910 = scalar_lea.vmem [#allocation3], 28
    %v911 = vld [vmem:[%s910] sm:$0xf]
    %v913 = vsel %vm64, %v909, 0
    %915 = vmatprep.subr.mxu0 0.0
    %916 = vmatpush1.msra.mxu0 0.0
    %917 = vmatprep.subr.mxu0 0.0
    %918 = vmatpush1.msra.mxu0 0.0
    %919 = vmatprep.subr.mxu0 0.0
    %920 = vmatpush1.msra.mxu0 0.0
    %921 = vmatprep.subr.mxu0 0.0
    %922 = vmatpush1.msra.mxu0 0.0
    %923 = vmatprep.subr.mxu0 0.0
    %924 = vmatpush1.msra.mxu0 0.0
    %925 = vmatprep.subr.mxu0 0.0
    %926 = vmatpush1.msra.mxu0 0.0
    %927 = vmatprep.subr.mxu0 0.0
    %928 = vmatpush1.msra.mxu0 0.0
    %929 = vmatprep.subr.mxu0 0.0
    %930 = vmatpush1.msra.mxu0 0.0
    %931 = vmatprep.subr.mxu0 %v63
    %932 = vmatpush1.msra.mxu0 %v62
    %933 = vmatprep.subr.mxu0 %v61
    %934 = vmatpush1.msra.mxu0 %v60
    %935 = vmatprep.subr.mxu0 %v59
    %936 = vmatpush1.msra.mxu0 %v58
    %937 = vmatprep.subr.mxu0 %v57
    %938 = vmatpush1.msra.mxu0 %v56
    %939 = vmatprep.subr.mxu0 %v55
    %940 = vmatpush1.msra.mxu0 %v54
    %941 = vmatprep.subr.mxu0 %v53
    %942 = vmatpush1.msra.mxu0 %v52
    %943 = vmatprep.subr.mxu0 %v51
    %944 = vmatpush1.msra.mxu0 %v50
    %945 = vmatprep.subr.mxu0 %v49
    %946 = vmatpush1.msra.mxu0 %v48
    %947 = vmatprep.subr.mxu0 0.0
    %948 = vmatpush2.msra.mxu0 0.0
    %949 = vmatprep.subr.mxu0 0.0
    %950 = vmatpush2.msra.mxu0 0.0
    %951 = vmatprep.subr.mxu0 0.0
    %952 = vmatpush2.msra.mxu0 0.0
    %953 = vmatprep.subr.mxu0 0.0
    %954 = vmatpush2.msra.mxu0 0.0
    %955 = vmatprep.subr.mxu0 0.0
    %956 = vmatpush2.msra.mxu0 0.0
    %957 = vmatprep.subr.mxu0 0.0
    %958 = vmatpush2.msra.mxu0 0.0
    %959 = vmatprep.subr.mxu0 0.0
    %960 = vmatpush2.msra.mxu0 0.0
    %961 = vmatprep.subr.mxu0 0.0
    %962 = vmatpush2.msra.mxu0 0.0
    %963 = vmatprep.subr.mxu0 0.0
    %964 = vmatpush2.msra.mxu0 0.0
    %965 = vmatprep.subr.mxu0 0.0
    %966 = vmatpush2.msra.mxu0 0.0
    %967 = vmatprep.subr.mxu0 0.0
    %968 = vmatpush2.msra.mxu0 0.0
    %969 = vmatprep.subr.mxu0 0.0
    %970 = vmatpush2.msra.mxu0 0.0
    %971 = vmatprep.subr.mxu0 0.0
    %972 = vmatpush2.msra.mxu0 0.0
    %973 = vmatprep.subr.mxu0 0.0
    %974 = vmatpush2.msra.mxu0 0.0
    %975 = vmatprep.subr.mxu0 0.0
    %976 = vmatpush2.msra.mxu0 0.0
    %977 = vmatprep.subr.mxu0 0.0
    %978 = vmatpush2.msra.mxu0 0.0
    %979 = vmatprep.mubr.f32.mxu0 0.0
    %980 = vmatmul.mubr.f32.gmra.mxu0 %v913
    %v981 = vpop.f32.mrf.mxu0
    %v982 = vadd.f32 0.0, %v981
    %v983 = vpop.f32.mrf.mxu0
    %v984 = vadd.f32 0.0, %v983
    %985 = vdwg.mxu0
    %v988 = vcombine.low %v982, %v984
    %v990 = vunpack.c.l.s4 1983009808
    %v991 = vunpack.c.0.s8 %v990
    %v992 = vlaneseq
    %v993 = vshrl.u32 %v992, 7
    %v994 = vsub.s32 %v991, %v993
    %v995 = vrot.slane %v988, %v994
    %v997 = vadd.f32 %v911, %v995
    %v998 = vxor.u32 %v997, 2147483648
    %v999 = vmul.f32 %v998, 1.442695
    %v1000 = vpow.pop %v999
    %v1001 = vadd.f32 %v1000, 1.0
    %v1002 = vrcp.pop %v1001
    %v1003 = vmul.f32 1.0, %v1002
    %v1005 = vrot.slane %v997, 2
    %v1007 = vtanh.pop %v1005
    %1008 = vrot.lane.b32.xlu0 %v997, 64
    %v1009 = vpop.permute.xlu0 %1008
    %v1010 = vrot.slane %v1009, 2
    %v1012 = vxor.u32 %v1010, 2147483648
    %v1013 = vmul.f32 %v1012, 1.442695
    %v1014 = vpow.pop %v1013
    %v1015 = vadd.f32 %v1014, 1.0
    %v1016 = vrcp.pop %v1015
    %v1017 = vmul.f32 1.0, %v1016
    %v1018 = vmul.f32 %v1003, %v903
    %v1019 = vmul.f32 %v1003, %v1007
    %1021 = vrot.lane.b32.xlu0 %v1019, 64
    %v1022 = vpop.permute.xlu0 %1021
    %v1024 = vadd.f32 %v1018, %v1022
    %v1025 = vtanh.pop %v1024
    %1027 = vrot.lane.b32.xlu0 %v1025, 64
    %v1028 = vpop.permute.xlu0 %1027
    %v1030 = vmul.f32 %v1017, %v1028
    %v1031 = vld [vmem:[%s2] sm:$0x1]
    %v1033 = vlaneseq
    %v1034 = vshrl.u32 %v1033, 7
    %v1035 = vsub.s32 0, %v1034
    %v1036 = vrot.slane %v1031, %v1035
    %v1038 = vmul.f32 %v1030, %v1036
    %vm1039 = vcmask 517120
    %v1040 = vsel %vm1039, %v1038, 0.0
    %1041 = vadd.xlane.f32.xlu0 %v1040
    %v1042 = vpop.xlane.xlu0 %1041
    %v1043 = vld [vmem:[#allocation2] sm:$0x1]
    %v1045 = vlaneseq
    %v1046 = vshrl.u32 %v1045, 7
    %v1047 = vsub.s32 0, %v1046
    %v1048 = vrot.slane %v1043, %v1047
    %v1050 = vadd.f32 %v1042, %v1048
    %vm1051 = vcmask 1024
    %1052 = vst.msk [vmem:[%s4] sm:$0x3] %vm1051, %v1050
    // Predicated region
    $region26: #{tpu_custom_call.1} parent=1 // pred_check
      _
    $region27: #{tpu_custom_call.1} parent=1 // pred_check_branch
      %1054 = sbr.rel (0) target = $region29
    $region28: #{tpu_custom_call.1} parent=1 // pred_region
      _
    $region29: #{tpu_custom_call.1} parent=1 // pred_fallthru
      _
    // Predicated region
    $region30: #{tpu_custom_call.1} parent=1 // pred_check
      _
    $region31: #{tpu_custom_call.1} parent=1 // pred_check_branch
      %1056 = sbr.rel (0) target = $region33
    $region32: #{tpu_custom_call.1} parent=1 // pred_region
      _
    $region33: #{tpu_custom_call.1} parent=1 // pred_fallthru
      _
    %1057 = vsyncpa [#allocation4], 1
    %1058 = vsyncpa [#allocation6], 1

</llo_original>
